<compile_context>
chip_gen: v7x
topology: tpu7x:2x2x1
jax: 0.10.0
libtpu: 0.0.40
codegen_flags: <defaults>
</compile_context>

<pallas_src>
import functools

import jax
import jax.numpy as jnp
from jax import lax
from jax.experimental import pallas as pl
from jax.experimental.pallas import tpu as pltpu


_TR_MAX = 256   # max rows per tile (multiple of 8 and 32)


def _lane_budget(tile_r):
    """Max lanes per tile; scaled so per-step input volume stays ~2.25 MiB."""
    if tile_r <= 64:
        return 4096
    if tile_r <= 128:
        return 2048
    return 1024


def _masked_bce_kernel(o_ref, t_ref, m_ref, sum_ref, cnt_ref,
                       acc_scratch, msk_scratch, *,
                       n_rows, n_cols, tile_r, tile_d, binary_target):
    """Grid = (row_tiles ["parallel"], col_tiles ["arbitrary" reduction]).

    acc_scratch / msk_scratch: VMEM (tile_r, tile_d) f32 accumulators, reset at
    the first column tile, reduced + written out at the last column tile.
    sum_ref / cnt_ref: per-row-tile (1, 1) partial outputs.
    """
    i = pl.program_id(0)           # row tile (parallel)
    j = pl.program_id(1)           # col tile (sequential reduction)

    @pl.when(j == 0)
    def _():
        acc_scratch[...] = jnp.zeros_like(acc_scratch)
        msk_scratch[...] = jnp.zeros_like(msk_scratch)

    # In-register upcast (no-op for f32 inputs, cheap unpack for bf16/int8).
    o = o_ref[...].astype(jnp.float32)
    t = t_ref[...].astype(jnp.float32)
    m = m_ref[...].astype(jnp.float32)

    # PyTorch BCELoss clamps log terms at -100 for numerical safety.
    if binary_target:
        # Single EUP log per element (targets guaranteed in {0, 1}).
        p = jnp.where(t > 0.5, o, 1.0 - o)
        per_elem = jnp.minimum(-jnp.log(p), jnp.float32(100.0))
    else:
        # Soft-target fallback: two logs.
        log_o = jnp.maximum(jnp.log(o), jnp.float32(-100.0))
        log_1mo = jnp.maximum(jnp.log(1.0 - o), jnp.float32(-100.0))
        per_elem = -(t * log_o + (1.0 - t) * log_1mo)

    # masked_select semantics: include element iff mask != 0.
    sel = m != 0.0

    # Fold ragged row/col tails into the selection mask (garbage beyond the
    # array bounds) — predicates emitted only when tiles don't divide evenly.
    if (n_rows % tile_r) != 0:
        rows = lax.broadcasted_iota(jnp.int32, (tile_r, tile_d), 0)
        sel = sel & (rows + i * tile_r < n_rows)
    if (n_cols % tile_d) != 0:
        cols = lax.broadcasted_iota(jnp.int32, (tile_r, tile_d), 1)
        sel = sel & (cols + j * tile_d < n_cols)

    # Steady-state work is pure VPU: where() (not multiply) so garbage NaN/inf
    # in the out-of-bounds region is dropped; no per-step XLU reductions.
    acc_scratch[...] += jnp.where(sel, per_elem, 0.0)
    msk_scratch[...] += jnp.where(sel, jnp.float32(1.0), jnp.float32(0.0))

    @pl.when(j == pl.num_programs(1) - 1)
    def _():
        # One cross-lane/sublane tree-reduce per row tile, in the epilogue only.
        sum_ref[...] = jnp.sum(acc_scratch[...], keepdims=True)
        cnt_ref[...] = jnp.sum(msk_scratch[...], keepdims=True)


@functools.partial(jax.jit, static_argnames=("binary_target",))
def masked_bce_loss(output, target, mask, binary_target=True):
    """output: (B, D) float in [0,1]; target: (B, D) in {0,1}; mask: (B, D) bool/byte.

    Returns a scalar float32: mean BCE over masked (valid) elements.
    """
    B, D = output.shape

    # Stream inputs in their native dtypes (cast happens inside the kernel) —
    # avoids extra HBM round-trips in the wrapper.  Only booleans get a cheap
    # 1B -> 1B widening to int8 so the block layout is well-defined.
    if mask.dtype == jnp.bool_:
        mask = mask.astype(jnp.int8)
    if not jnp.issubdtype(target.dtype, jnp.floating):
        target = target.astype(jnp.float32)
    if not jnp.issubdtype(output.dtype, jnp.floating):
        output = output.astype(jnp.float32)

    # Tile choice: full dim when small (always legal), otherwise an aligned big
    # tile with in-kernel tail masking (no wrapper-side padding pass).
    tile_r = B if B <= _TR_MAX else _TR_MAX
    td_max = _lane_budget(tile_r)
    tile_d = D if D <= td_max else td_max
    n_r = pl.cdiv(B, tile_r)
    n_c = pl.cdiv(D, tile_d)

    kernel = functools.partial(
        _masked_bce_kernel,
        n_rows=B, n_cols=D, tile_r=tile_r, tile_d=tile_d,
        binary_target=binary_target)

    in_spec = pl.BlockSpec((tile_r, tile_d), lambda i, j: (i, j))
    # Per-row-tile scalar partials; leading dim squeezed.
    out_spec = pl.BlockSpec((None, 1, 1), lambda i, j: (i, 0, 0))

    sums, counts = pl.pallas_call(
        kernel,
        out_shape=(jax.ShapeDtypeStruct((n_r, 1, 1), jnp.float32),
                   jax.ShapeDtypeStruct((n_r, 1, 1), jnp.float32)),
        grid_spec=pltpu.PrefetchScalarGridSpec(
            num_scalar_prefetch=0,
            grid=(n_r, n_c),
            in_specs=[in_spec, in_spec, in_spec],
            out_specs=[out_spec, out_spec],
            scratch_shapes=[pltpu.VMEM((tile_r, tile_d), jnp.float32),
                            pltpu.VMEM((tile_r, tile_d), jnp.float32)]),
        compiler_params=pltpu.CompilerParams(
            # Row tiles split across TensorCores (v7x megacore); column axis is
            # the sequential reduction.
            dimension_semantics=("parallel", "arbitrary")),
    )(output, target, mask)

    # Tiny cross-row-tile reduce + divide in plain JAX (keeps the parallel row
    # axis free of any shared accumulator).
    return jnp.sum(sums) / jnp.sum(counts)


def _reference_masked_bce(output, target, mask):
    """Pure-JAX reference mirroring PyTorch MaskedBCELoss."""
    o = output.astype(jnp.float32).reshape(-1)
    t = target.astype(jnp.float32).reshape(-1)
    m = (mask.reshape(-1) != 0).astype(jnp.float32)
    log_o = jnp.maximum(jnp.log(o), -100.0)
    log_1mo = jnp.maximum(jnp.log(1.0 - o), -100.0)
    per_elem = -(t * log_o + (1.0 - t) * log_1mo)
    return jnp.sum(per_elem * m) / jnp.sum(m)


if __name__ == "__main__":
    key = jax.random.PRNGKey(0)

    def make_case(k, B, D):
        k1, k2, k3 = jax.random.split(k, 3)
        out = jax.random.uniform(k1, (B, D), jnp.float32,
                                 minval=1e-4, maxval=1.0 - 1e-4)
        tgt = (jax.random.uniform(k2, (B, D)) > 0.5).astype(jnp.float32)
        msk = jax.random.uniform(k3, (B, D)) > 0.3
        return out, tgt, msk

    k_small, k_big = jax.random.split(key)

    # --- Small case (single tile); also exercises the -100 log clamp. ---
    o, t, m = make_case(k_small, 8, 200)
    o = o.at[0, 0].set(0.0).at[0, 1].set(1.0)
    m = m.at[0, 0].set(True).at[0, 1].set(True)
    ref = jax.block_until_ready(_reference_masked_bce(o, t, m))
    for bt in (True, False):   # binary one-log path and soft-target fallback
        loss = jax.block_until_ready(masked_bce_loss(o, t, m, binary_target=bt))
        assert jnp.isfinite(loss), f"non-finite loss: {loss}"
        assert jnp.allclose(loss, ref, rtol=1e-5, atol=1e-6), (
            f"pallas={loss} ref={ref} binary_target={bt}")

    # --- Larger ragged case: multi-tile grid + in-kernel row/col tail masks. ---
    o, t, m = make_case(k_big, 264, 1300)
    ref = jax.block_until_ready(_reference_masked_bce(o, t, m))
    loss = jax.block_until_ready(masked_bce_loss(o, t, m))
    assert jnp.isfinite(loss), f"non-finite loss: {loss}"
    assert jnp.allclose(loss, ref, rtol=2e-4, atol=1e-6), (
        f"pallas={loss} ref={ref}")

    print("KERNEL_OK")
</pallas_src>

<mosaic_0001>
module attributes {stable_mosaic.version = 11 : i64} {
  func.func @_masked_bce_kernel(%arg0: i32, %arg1: i32, %arg2: memref<8x200xf32, #tpu.memory_space<vmem>>, %arg3: memref<8x200xf32, #tpu.memory_space<vmem>>, %arg4: memref<8x200xi8, #tpu.memory_space<vmem>>, %arg5: memref<1x1x1xf32, #tpu.memory_space<vmem>>, %arg6: memref<1x1x1xf32, #tpu.memory_space<vmem>>, %arg7: memref<8x200xf32, #tpu.memory_space<vmem>>, %arg8: memref<8x200xf32, #tpu.memory_space<vmem>>) attributes {dimension_semantics = [#tpu.dimension_semantics<parallel>, #tpu.dimension_semantics<arbitrary>], iteration_bounds = array<i64: 1, 1>, scalar_prefetch = 0 : i64, scratch_operands = 2 : i64, tpu.core_type = #tpu.core_type<tc>, window_params = [{transform_indices = @transform_0, window_bounds = array<i64: 8, 200>}, {transform_indices = @transform_1, window_bounds = array<i64: 8, 200>}, {transform_indices = @transform_2, window_bounds = array<i64: 8, 200>}, {transform_indices = @transform_3, window_bounds = array<i64: 1, 1, 1>}, {transform_indices = @transform_4, window_bounds = array<i64: 1, 1, 1>}]} {
    %c0_i32 = arith.constant 0 : i32
    %0 = arith.cmpi eq, %arg1, %c0_i32 : i32
    %1 = arith.extui %0 : i1 to i32
    %c0_i32_0 = arith.constant 0 : i32
    %2 = arith.cmpi ne, %1, %c0_i32_0 : i32
    scf.if %2 {
      %cst_23 = arith.constant 0.000000e+00 : f32
      %33 = vector.broadcast %cst_23 : f32 to vector<8x200xf32>
      %c0_24 = arith.constant 0 : index
      %c0_25 = arith.constant 0 : index
      %34 = vector.load %arg7[%c0_24, %c0_25] : memref<8x200xf32, #tpu.memory_space<vmem>>, vector<8x200xf32>
      tpu.vector_store %arg7[%c0_24, %c0_25], %33 {strides = array<i32>} : memref<8x200xf32, #tpu.memory_space<vmem>>, vector<8x200xf32>,
      %cst_26 = arith.constant 0.000000e+00 : f32
      %35 = vector.broadcast %cst_26 : f32 to vector<8x200xf32>
      %c0_27 = arith.constant 0 : index
      %c0_28 = arith.constant 0 : index
      %36 = vector.load %arg8[%c0_27, %c0_28] : memref<8x200xf32, #tpu.memory_space<vmem>>, vector<8x200xf32>
      tpu.vector_store %arg8[%c0_27, %c0_28], %35 {strides = array<i32>} : memref<8x200xf32, #tpu.memory_space<vmem>>, vector<8x200xf32>,
    } else {
    }
    %c0 = arith.constant 0 : index
    %c0_1 = arith.constant 0 : index
    %3 = vector.load %arg2[%c0, %c0_1] : memref<8x200xf32, #tpu.memory_space<vmem>>, vector<8x200xf32>
    %c0_2 = arith.constant 0 : index
    %c0_3 = arith.constant 0 : index
    %4 = vector.load %arg3[%c0_2, %c0_3] : memref<8x200xf32, #tpu.memory_space<vmem>>, vector<8x200xf32>
    %c0_4 = arith.constant 0 : index
    %c0_5 = arith.constant 0 : index
    %5 = vector.load %arg4[%c0_4, %c0_5] : memref<8x200xi8, #tpu.memory_space<vmem>>, vector<8x200xi8>
    %6 = arith.sitofp %5 : vector<8x200xi8> to vector<8x200xf32>
    %cst = arith.constant 5.000000e-01 : f32
    %7 = vector.broadcast %cst : f32 to vector<8x200xf32>
    %8 = arith.cmpf ogt, %4, %7 : vector<8x200xf32>
    %cst_6 = arith.constant 1.000000e+00 : f32
    %9 = vector.broadcast %cst_6 : f32 to vector<8x200xf32>
    %10 = arith.subf %9, %3 : vector<8x200xf32>
    %11 = arith.select %8, %3, %10 : vector<8x200xi1>, vector<8x200xf32>
    %12 = math.log %11 : vector<8x200xf32>
    %cst_7 = arith.constant 0.000000e+00 : f32
    %13 = vector.broadcast %cst_7 : f32 to vector<8x200xf32>
    %14 = arith.subf %13, %12 : vector<8x200xf32>
    %cst_8 = arith.constant 1.000000e+02 : f32
    %15 = vector.broadcast %cst_8 : f32 to vector<8x200xf32>
    %16 = arith.minimumf %14, %15 : vector<8x200xf32>
    %cst_9 = arith.constant 0.000000e+00 : f32
    %17 = vector.broadcast %cst_9 : f32 to vector<8x200xf32>
    %18 = arith.cmpf one, %6, %17 : vector<8x200xf32>
    %c0_10 = arith.constant 0 : index
    %c0_11 = arith.constant 0 : index
    %19 = vector.load %arg7[%c0_10, %c0_11] : memref<8x200xf32, #tpu.memory_space<vmem>>, vector<8x200xf32>
    %cst_12 = arith.constant 0.000000e+00 : f32
    %20 = vector.broadcast %cst_12 : f32 to vector<8x200xf32>
    %21 = arith.select %18, %16, %20 : vector<8x200xi1>, vector<8x200xf32>
    %22 = arith.addf %19, %21 : vector<8x200xf32>
    %c0_13 = arith.constant 0 : index
    %c0_14 = arith.constant 0 : index
    %23 = vector.load %arg7[%c0_13, %c0_14] : memref<8x200xf32, #tpu.memory_space<vmem>>, vector<8x200xf32>
    tpu.vector_store %arg7[%c0_13, %c0_14], %22 {strides = array<i32>} : memref<8x200xf32, #tpu.memory_space<vmem>>, vector<8x200xf32>,
    %c0_15 = arith.constant 0 : index
    %c0_16 = arith.constant 0 : index
    %24 = vector.load %arg8[%c0_15, %c0_16] : memref<8x200xf32, #tpu.memory_space<vmem>>, vector<8x200xf32>
    %cst_17 = arith.constant 1.000000e+00 : f32
    %cst_18 = arith.constant 0.000000e+00 : f32
    %25 = vector.broadcast %cst_17 : f32 to vector<8x200xf32>
    %26 = vector.broadcast %cst_18 : f32 to vector<8x200xf32>
    %27 = arith.select %18, %25, %26 : vector<8x200xi1>, vector<8x200xf32>
    %28 = arith.addf %24, %27 : vector<8x200xf32>
    %c0_19 = arith.constant 0 : index
    %c0_20 = arith.constant 0 : index
    %29 = vector.load %arg8[%c0_19, %c0_20] : memref<8x200xf32, #tpu.memory_space<vmem>>, vector<8x200xf32>
    tpu.vector_store %arg8[%c0_19, %c0_20], %28 {strides = array<i32>} : memref<8x200xf32, #tpu.memory_space<vmem>>, vector<8x200xf32>,
    %c0_i32_21 = arith.constant 0 : i32
    %30 = arith.cmpi eq, %arg1, %c0_i32_21 : i32
    %31 = arith.extui %30 : i1 to i32
    %c0_i32_22 = arith.constant 0 : i32
    %32 = arith.cmpi ne, %31, %c0_i32_22 : i32
    scf.if %32 {
      %c0_23 = arith.constant 0 : index
      %c0_24 = arith.constant 0 : index
      %33 = vector.load %arg7[%c0_23, %c0_24] : memref<8x200xf32, #tpu.memory_space<vmem>>, vector<8x200xf32>
      %34 = vector.shape_cast %33 : vector<8x200xf32> to vector<1x8x200xf32>
      %cst_25 = arith.constant dense<0.000000e+00> : vector<1xf32>
      %35 = vector.multi_reduction <add>, %34, %cst_25 [1, 2] : vector<1x8x200xf32> to vector<1xf32>
      %36 = vector.shape_cast %35 : vector<1xf32> to vector<1x1x1xf32>
      %37 = vector.extract %36[0, 0, 0] : f32 from vector<1x1x1xf32>
      %38 = vector.broadcast %37 : f32 to vector<1x1xf32>
      %c0_26 = arith.constant 0 : index
      %c0_27 = arith.constant 0 : index
      %c0_28 = arith.constant 0 : index
      %39 = vector.load %arg5[%c0_26, %c0_27, %c0_28] : memref<1x1x1xf32, #tpu.memory_space<vmem>>, vector<1x1x1xf32>
      %40 = vector.shape_cast %39 : vector<1x1x1xf32> to vector<1x1xf32>
      %41 = vector.shape_cast %38 : vector<1x1xf32> to vector<1x1x1xf32>
      tpu.vector_store %arg5[%c0_26, %c0_27, %c0_28], %41 {strides = array<i32>} : memref<1x1x1xf32, #tpu.memory_space<vmem>>, vector<1x1x1xf32>,
      %c0_29 = arith.constant 0 : index
      %c0_30 = arith.constant 0 : index
      %42 = vector.load %arg8[%c0_29, %c0_30] : memref<8x200xf32, #tpu.memory_space<vmem>>, vector<8x200xf32>
      %43 = vector.shape_cast %42 : vector<8x200xf32> to vector<1x8x200xf32>
      %cst_31 = arith.constant dense<0.000000e+00> : vector<1xf32>
      %44 = vector.multi_reduction <add>, %43, %cst_31 [1, 2] : vector<1x8x200xf32> to vector<1xf32>
      %45 = vector.shape_cast %44 : vector<1xf32> to vector<1x1x1xf32>
      %46 = vector.extract %45[0, 0, 0] : f32 from vector<1x1x1xf32>
      %47 = vector.broadcast %46 : f32 to vector<1x1xf32>
      %c0_32 = arith.constant 0 : index
      %c0_33 = arith.constant 0 : index
      %c0_34 = arith.constant 0 : index
      %48 = vector.load %arg6[%c0_32, %c0_33, %c0_34] : memref<1x1x1xf32, #tpu.memory_space<vmem>>, vector<1x1x1xf32>
      %49 = vector.shape_cast %48 : vector<1x1x1xf32> to vector<1x1xf32>
      %50 = vector.shape_cast %47 : vector<1x1xf32> to vector<1x1x1xf32>
      tpu.vector_store %arg6[%c0_32, %c0_33, %c0_34], %50 {strides = array<i32>} : memref<1x1x1xf32, #tpu.memory_space<vmem>>, vector<1x1x1xf32>,
    } else {
    }
    return
  }
  func.func @transform_0(%arg0: i32, %arg1: i32) -> (i32, i32) {
    %c0_i32 = arith.constant 0 : i32
    return %arg0, %arg1 : i32, i32
  }
  func.func @transform_1(%arg0: i32, %arg1: i32) -> (i32, i32) {
    %c0_i32 = arith.constant 0 : i32
    return %arg0, %arg1 : i32, i32
  }
  func.func @transform_2(%arg0: i32, %arg1: i32) -> (i32, i32) {
    %c0_i32 = arith.constant 0 : i32
    return %arg0, %arg1 : i32, i32
  }
  func.func @transform_3(%arg0: i32, %arg1: i32) -> (i32, i32, i32) {
    %c0_i32 = arith.constant 0 : i32
    %c0_i32_0 = arith.constant 0 : i32
    %c0_i32_1 = arith.constant 0 : i32
    return %arg0, %c0_i32, %c0_i32_0 : i32, i32, i32
  }
  func.func @transform_4(%arg0: i32, %arg1: i32) -> (i32, i32, i32) {
    %c0_i32 = arith.constant 0 : i32
    %c0_i32_0 = arith.constant 0 : i32
    %c0_i32_1 = arith.constant 0 : i32
    return %arg0, %c0_i32, %c0_i32_0 : i32, i32, i32
  }
}

</mosaic_0001>

<llo_original>
// kernel: masked_bce_loss.1
$region0: #{masked_bce_loss.1}
  #allocation0 [shape = 'u32[]', space=smem, size = 0x4, offset = 0x4, fixed_abs, tag = 'smem constant byte address 0x4 - core index']
  #allocation1 [shape = 'u32[144,128]{1,0:T(1,128)}', space=vmem, size = 0x12000, scoped, tag = 'internal scratch']
  #allocation2 [shape = 'f32[8,200]{1,0:T(8,128)}', space=vmem, size = 0x2000, scoped, tag = 'scratch operand']
  #allocation3 [shape = 'f32[8,200]{1,0:T(8,128)}', space=vmem, size = 0x2000, scoped, tag = 'scratch operand']
  %s0 = inlined_call_operand.hbm [shape: f32[8,200], index: 0, kind: input, shape index: {}]
  %s1 = inlined_call_operand.hbm [shape: f32[8,200], index: 1, kind: input, shape index: {}]
  %s2 = inlined_call_operand.vmem [shape: s8[8,200], index: 2, kind: input, shape index: {}]
  %s3 = inlined_call_operand.hbm [shape: f32[1,1,1], index: 3, kind: output, shape index: {0}]
  %s4 = inlined_call_operand.hbm [shape: f32[1,1,1], index: 4, kind: output, shape index: {1}]
  %5 = xla_tuple %s3, %s4
  %s6 = sld [smem:[#allocation0]]
  $region46: #{masked_bce_loss.1} parent=0
    _
  %s8 = ssub.s32 1, %s6
  %s9 = scalar_select 0, %s8, %s6
  $region1: #{masked_bce_loss.1} parent=0
    #allocation4 [shape = 'u8[8192]{0}', space=vmem, size = 0x2000, scoped, tag = 'input window, operand 0, single buffered']
    #allocation5 [shape = 's32[1]{0}', space=sflag, size = 0x4, scoped, tag = 'scoped memory for masked_bce_loss.1']
    #allocation6 [shape = 's32[1]{0}', space=sflag, size = 0x4, scoped, tag = 'scoped memory for masked_bce_loss.1']
    #allocation7 [shape = 'u8[8192]{0}', space=vmem, size = 0x2000, scoped, tag = 'input window, operand 1, single buffered']
    #allocation8 [shape = 's32[1]{0}', space=sflag, size = 0x4, scoped, tag = 'scoped memory for masked_bce_loss.1']
    #allocation9 [shape = 'u8[512]{0}', space=vmem, size = 0x400, scoped, tag = 'output window, operand 0, single buffered']
    #allocation10 [shape = 'u8[512]{0}', space=vmem, size = 0x400, scoped, tag = 'output window, operand 1, single buffered']
    #allocation11 [shape = 's32[1]{0}', space=sflag, size = 0x4, scoped, tag = 'scoped memory for masked_bce_loss.1']
    %10 = vsyncpa [#allocation5], 0
    %11 = vsyncpa [#allocation8], 0
    %12 = vsyncpa [#allocation6], 0
    %13 = vsyncpa [#allocation11], 0
    // Predicated region
    $region2: #{masked_bce_loss.1} parent=1 // pred_check
      _
    $region3: #{masked_bce_loss.1} parent=1 // pred_check_branch
      %15 = sbr.rel (0) target = $region5
    $region4: #{masked_bce_loss.1} parent=1 // pred_region
      %s17 = ssub.s32 256, 256
      %18 = vsyncadd [#allocation5], %s17
      %s20 = sshll.u32 [#allocation4], 4
      %s21 = int_to_ptr.vmem [resolvable:$true] %s20
      %23 = dma.hbm_to_vmem [thread:$0]  %s0, 256, %s21, [#allocation5]
    $region5: #{masked_bce_loss.1} parent=1 // pred_fallthru
      _
    // Predicated region
    $region6: #{masked_bce_loss.1} parent=1 // pred_check
      _
    $region7: #{masked_bce_loss.1} parent=1 // pred_check_branch
      %25 = sbr.rel (0) target = $region9
    $region8: #{masked_bce_loss.1} parent=1 // pred_region
      %s27 = ssub.s32 256, 256
      %28 = vsyncadd [#allocation8], %s27
      %s30 = sshll.u32 [#allocation7], 4
      %s31 = int_to_ptr.vmem [resolvable:$true] %s30
      %33 = dma.hbm_to_vmem [thread:$0]  %s1, 256, %s31, [#allocation8]
    $region9: #{masked_bce_loss.1} parent=1 // pred_fallthru
      _
    // Predicated region
    $region10: #{masked_bce_loss.1} parent=1 // pred_check
      _
    $region11: #{masked_bce_loss.1} parent=1 // pred_check_branch
      %35 = sbr.rel (0) target = $region13
    $region12: #{masked_bce_loss.1} parent=1 // pred_region
      _
    $region13: #{masked_bce_loss.1} parent=1 // pred_fallthru
      _
    // Predicated region
    $region14: #{masked_bce_loss.1} parent=1 // pred_check
      _
    $region15: #{masked_bce_loss.1} parent=1 // pred_check_branch
      %37 = sbr.rel (0) target = $region17
    $region16: #{masked_bce_loss.1} parent=1 // pred_region
      %38 = dma.done [#allocation5], 256
    $region17: #{masked_bce_loss.1} parent=1 // pred_fallthru
      _
    // Predicated region
    $region18: #{masked_bce_loss.1} parent=1 // pred_check
      _
    $region19: #{masked_bce_loss.1} parent=1 // pred_check_branch
      %40 = sbr.rel (0) target = $region21
    $region20: #{masked_bce_loss.1} parent=1 // pred_region
      %41 = dma.done [#allocation8], 256
    $region21: #{masked_bce_loss.1} parent=1 // pred_fallthru
      _
    %p42 = scmp.eq.s32.totalorder 0, 0
    // Predicated region
    $region22: #{masked_bce_loss.1} parent=1 // pred_check
      %p43 = pneg %p42
    $region23: #{masked_bce_loss.1} parent=1 // pred_check_branch
      %45 = sbr.rel (%p43) target = $region25
    $region24: #{masked_bce_loss.1} parent=1 // pred_region
      %46 = vst [vmem:[#allocation2] sm:$0xff] 0.0
      %vm47 = vcmask 588800
      %48 = vst.msk [vmem:[#allocation2 + $0x8] sm:$0xff] %vm47, 0.0
      %49 = vst [vmem:[#allocation3] sm:$0xff] 0.0
      %50 = vst.msk [vmem:[#allocation3 + $0x8] sm:$0xff] %vm47, 0.0
    $region25: #{masked_bce_loss.1} parent=1 // pred_fallthru
      _
    %v51 = vld [vmem:[#allocation4] sm:$0xff]
    %v52 = vld [vmem:[#allocation4 + $0x8] sm:$0xff]
    %v53 = vld [vmem:[#allocation7] sm:$0xff]
    %v54 = vld [vmem:[#allocation7 + $0x8] sm:$0xff]
    %v55 = vld [vmem:[%s2] sm:$0xf]
    %v56 = vunpack.c.0.s8 %v55
    %v57 = vunpack.c.1.s8 %v55
    %v58 = vcvt.s32.f32 %v56
    %v59 = vcvt.s32.f32 %v57
    %vm60 = vcmp.gt.f32.partialorder %v53, 0.5
    %vm61 = vcmp.gt.f32.partialorder %v54, 0.5
    %v62 = vsub.f32 1.0, %v51
    %v63 = vsub.f32 1.0, %v52
    %v64 = vsel %vm60, %v51, %v62
    %v65 = vsel %vm61, %v52, %v63
    %v66 = vlog2.pop %v64
    %v67 = vmul.f32 %v66, 0.6931472
    %v68 = vlog2.pop %v65
    %v69 = vmul.f32 %v68, 0.6931472
    %v70 = vsub.f32 0.0, %v67
    %v71 = vsub.f32 0.0, %v69
    %v72 = vmin.f32 %v70, 100.0
    %v73 = vmin.f32 %v71, 100.0
    %vm74 = vcmp.ne.f32.partialorder %v58, 0.0
    %vm75 = vcmp.ne.f32.partialorder %v59, 0.0
    %v76 = vld [vmem:[#allocation2] sm:$0xff]
    %v77 = vld [vmem:[#allocation2 + $0x8] sm:$0xff]
    %v78 = vsel %vm74, %v72, 0.0
    %v79 = vsel %vm75, %v73, 0.0
    %v80 = vadd.f32 %v76, %v78
    %v81 = vadd.f32 %v77, %v79
    %82 = vst [vmem:[#allocation2] sm:$0xff] %v80
    %vm83 = vcmask 588800
    %84 = vst.msk [vmem:[#allocation2 + $0x8] sm:$0xff] %vm83, %v81
    %v85 = vld [vmem:[#allocation3] sm:$0xff]
    %v86 = vld [vmem:[#allocation3 + $0x8] sm:$0xff]
    %v87 = vsel %vm74, 1.0, 0.0
    %v88 = vsel %vm75, 1.0, 0.0
    %v89 = vadd.f32 %v85, %v87
    %v90 = vadd.f32 %v86, %v88
    %91 = vst [vmem:[#allocation3] sm:$0xff] %v89
    %92 = vst.msk [vmem:[#allocation3 + $0x8] sm:$0xff] %vm83, %v90
    // Predicated region
    $region26: #{masked_bce_loss.1} parent=1 // pred_check
      %p93 = pneg %p42
    $region27: #{masked_bce_loss.1} parent=1 // pred_check_branch
      %95 = sbr.rel (%p93) target = $region29
    $region28: #{masked_bce_loss.1} parent=1 // pred_region
      %v96 = vld [vmem:[#allocation2] sm:$0xff]
      %v97 = vld [vmem:[#allocation2 + $0x8] sm:$0xff]
      %v98 = vsel %vm83, %v97, 0.0
      %v99 = vadd.f32 %v96, %v98
      %100 = vadd.xlane.f32.xlu0 %v99
      %v101 = vpop.xlane.xlu0 %100
      %v102 = vrot.slane %v101, 4
      %v103 = vadd.f32 %v101, %v102
      %v104 = vrot.slane %v103, 2
      %v105 = vadd.f32 %v103, %v104
      %v106 = vrot.slane %v105, 1
      %v107 = vadd.f32 %v105, %v106
      %s108 = vtos %v107
      %v109 = vstv %s108
      %vm110 = vcmask 0
      %111 = vst.msk [vmem:[#allocation9] sm:$0x1] %vm110, %v109
      %v112 = vld [vmem:[#allocation3] sm:$0xff]
      %v113 = vld [vmem:[#allocation3 + $0x8] sm:$0xff]
      %v114 = vsel %vm83, %v113, 0.0
      %v115 = vadd.f32 %v112, %v114
      %116 = vadd.xlane.f32.xlu0 %v115
      %v117 = vpop.xlane.xlu0 %116
      %v118 = vrot.slane %v117, 4
      %v119 = vadd.f32 %v117, %v118
      %v120 = vrot.slane %v119, 2
      %v121 = vadd.f32 %v119, %v120
      %v122 = vrot.slane %v121, 1
      %v123 = vadd.f32 %v121, %v122
      %s124 = vtos %v123
      %v125 = vstv %s124
      %126 = vst.msk [vmem:[#allocation10] sm:$0x1] %vm110, %v125
    $region29: #{masked_bce_loss.1} parent=1 // pred_fallthru
      _
    // Predicated region
    $region30: #{masked_bce_loss.1} parent=1 // pred_check
      _
    $region31: #{masked_bce_loss.1} parent=1 // pred_check_branch
      %128 = sbr.rel (0) target = $region33
    $region32: #{masked_bce_loss.1} parent=1 // pred_region
      %s130 = ssub.s32 16, 16
      %131 = vsyncadd [#allocation6], %s130
      %s133 = sshll.u32 [#allocation9], 4
      %s134 = int_to_ptr.vmem [resolvable:$true] %s133
      %136 = dma.vmem_to_hbm [thread:$0]  %s134, 16, %s3, [#allocation6]
    $region33: #{masked_bce_loss.1} parent=1 // pred_fallthru
      _
    // Predicated region
    $region34: #{masked_bce_loss.1} parent=1 // pred_check
      _
    $region35: #{masked_bce_loss.1} parent=1 // pred_check_branch
      %138 = sbr.rel (0) target = $region37
    $region36: #{masked_bce_loss.1} parent=1 // pred_region
      %s140 = ssub.s32 16, 16
      %141 = vsyncadd [#allocation11], %s140
      %s143 = sshll.u32 [#allocation10], 4
      %s144 = int_to_ptr.vmem [resolvable:$true] %s143
      %146 = dma.vmem_to_hbm [thread:$0]  %s144, 16, %s4, [#allocation11]
    $region37: #{masked_bce_loss.1} parent=1 // pred_fallthru
      _
    // Predicated region
    $region38: #{masked_bce_loss.1} parent=1 // pred_check
      _
    $region39: #{masked_bce_loss.1} parent=1 // pred_check_branch
      %148 = sbr.rel (0) target = $region41
    $region40: #{masked_bce_loss.1} parent=1 // pred_region
      %149 = dma.done [#allocation6], 16
    $region41: #{masked_bce_loss.1} parent=1 // pred_fallthru
      _
    // Predicated region
    $region42: #{masked_bce_loss.1} parent=1 // pred_check
      _
    $region43: #{masked_bce_loss.1} parent=1 // pred_check_branch
      %151 = sbr.rel (0) target = $region45
    $region44: #{masked_bce_loss.1} parent=1 // pred_region
      %152 = dma.done [#allocation11], 16
    $region45: #{masked_bce_loss.1} parent=1 // pred_fallthru
      _
    %153 = vsyncpa [#allocation5], 1
    %154 = vsyncpa [#allocation8], 1
    %155 = vsyncpa [#allocation6], 1
    %156 = vsyncpa [#allocation11], 1

</llo_original>
